<compile_context>
chip_gen: v6e
topology: v6e:2x2x1
jax: 0.10.0
libtpu: 0.0.40
codegen_flags: <defaults>
</compile_context>

<pallas_src>
import jax
import jax.numpy as jnp
from jax.experimental import pallas as pl
from jax.experimental.pallas import tpu as pltpu

_GATE_ITEM = 4  # the gate is kept in float32


def _vmem_capacity_bytes():
    """Physical VMEM per TensorCore; falls back to the smallest (v7x) value."""
    try:
        cap = int(pltpu.get_tpu_info().vmem_capacity_bytes)
        if cap > 0:
            return cap
    except Exception:
        pass
    return 64 * 1024 * 1024


# ---------------------------------------------------------------------------
# Kernel 1: gate = sigmoid(visual @ W.T + b) -- MXU matmul tiled over output
# columns (robust to large D).  Only used when the problem is big enough that
# a dedicated kernel beats letting XLA fuse the tiny matmul.
# ---------------------------------------------------------------------------
def gate_kernel(v_ref, w_ref, b_ref, g_ref):
    logits = jnp.dot(v_ref[...], w_ref[...],
                     preferred_element_type=jnp.float32) + b_ref[...]
    g_ref[...] = jax.nn.sigmoid(logits).astype(g_ref.dtype)


def _gate_pallas(visual, w_t, b2, budget, capacity):
    BV, D = visual.shape
    v_item = visual.dtype.itemsize
    w_item = w_t.dtype.itemsize

    if D % 128 == 0:
        tn = min(D, 512)
        while tn > 128 and 2 * (BV * D * v_item + D * tn * w_item
                                + tn * 4 + BV * tn * 4) > budget:
            tn //= 2
    else:
        tn = D  # full-extent blocks for small / unaligned D
    n_n = pl.cdiv(D, tn)

    ws = 2 * (BV * D * v_item + D * tn * w_item + tn * 4 + BV * tn * 4)
    vmem_limit = int(min(max(ws + (2 << 20), 16 << 20), int(0.85 * capacity)))

    return pl.pallas_call(
        gate_kernel,
        out_shape=jax.ShapeDtypeStruct((BV, D), jnp.float32),
        grid_spec=pltpu.PrefetchScalarGridSpec(
            num_scalar_prefetch=0,
            grid=(n_n,),
            in_specs=[
                pl.BlockSpec((BV, D), lambda j: (0, 0)),   # visual: resident
                pl.BlockSpec((D, tn), lambda j: (0, j)),   # W.T column tile
                pl.BlockSpec((1, tn), lambda j: (0, j)),   # bias column tile
            ],
            out_specs=pl.BlockSpec((BV, tn), lambda j: (0, j)),
        ),
        compiler_params=pltpu.CompilerParams(
            dimension_semantics=("parallel",),
            vmem_limit_bytes=vmem_limit),
        cost_estimate=pl.CostEstimate(
            flops=2 * BV * D * D,
            transcendentals=BV * D,
            bytes_accessed=v_item * BV * D + w_item * D * D + 4 * D + 4 * BV * D),
    )(visual, w_t, b2)


# ---------------------------------------------------------------------------
# Kernel 2 (the HBM-write-bound hot kernel): lane-dense broadcast multiply.
#   g_ref: (bv_t, 1, sd_t)   gate rows pre-tiled along lanes to S*D (f32)
#   t_ref: (bt_t, sd_t)      text tile (resident across the inner BV axis)
#   o_ref: (bv_t, bt_t, sd_t)
# ---------------------------------------------------------------------------
def bcast_mul_kernel(g_ref, t_ref, o_ref):
    o_ref[...] = (g_ref[...] * t_ref[...][None, :, :]).astype(o_ref.dtype)


def _choose_bcast_tiles(BV, BT, SD, in_item, out_item, budget):
    """Pick (bv_tile, bt_tile, sd_tile) for the broadcast-multiply kernel.

    Preference order: keep BV fused (text is then read exactly once from HBM),
    keep the full lane width S*D, and take BT tiles as big as the VMEM budget
    and a ~8 MiB/step output target allow.  Fall back to SD (lane) tiling in
    128-multiples and, as a last resort, BV tiling for extreme shapes.
    """
    target_out = 8 << 20  # ~8 MiB of output per grid step

    def legal_bt(bt):
        if bt >= BT:
            return BT
        bt = (bt // 8) * 8          # tiled BT blocks must be sublane aligned
        return bt if bt >= 8 else 0

    # ---- preferred: BV fused, full SD, tile BT ----
    bv_t, sd_t = BV, SD
    denom = 2 * sd_t * (in_item + bv_t * out_item)
    avail = budget - 2 * bv_t * sd_t * _GATE_ITEM
    bt_cap = legal_bt(avail // denom) if avail > 0 else 0
    if bt_cap:
        bt_want = legal_bt(max(1, target_out // max(1, bv_t * sd_t * out_item)))
        bt_t = min(bt_cap, bt_want) if bt_want else bt_cap
        return bv_t, bt_t, sd_t

    # ---- fallback: tile SD (lane dim) in 128-multiples, BV still fused ----
    if SD % 128 == 0:
        bt_t = BT if BT <= 8 else 8
        denom = 2 * (bv_t * _GATE_ITEM + bt_t * in_item + bv_t * bt_t * out_item)
        sd_cap = (budget // denom // 128) * 128
        if sd_cap >= 128:
            return bv_t, bt_t, min(sd_cap, SD)

    # ---- last resort: also tile BV (leading dim, no (8,128) alignment rule) ----
    bt_t = BT if BT <= 8 else 8
    sd_t = 128 if SD % 128 == 0 else SD
    denom = 2 * sd_t * (_GATE_ITEM + bt_t * out_item)
    avail = budget - 2 * bt_t * sd_t * in_item
    bv_t = max(1, min(BV, avail // denom)) if avail > 0 else 1
    return bv_t, bt_t, sd_t


def cross_attention(visual, text, w, b, *, bt_tile=None, out_dtype=None,
                    gate_impl="auto"):
    """visual: (BV, D), text: (BT, S, D), w: (D, D) [PyTorch Linear layout], b: (D,)."""
    BV, D = visual.shape
    BT, S, D2 = text.shape
    assert D == D2
    SD = S * D
    out_dtype = out_dtype or jnp.result_type(visual.dtype, text.dtype)

    capacity = _vmem_capacity_bytes()
    budget = max(min(int(0.70 * capacity), capacity - (12 << 20)), 8 << 20)

    # ---------------- gate = sigmoid(visual @ W.T + b) ----------------
    w_t = w.T                  # (in, out) so kernel computes x @ W.T like PyTorch
    b2 = b.reshape(1, D)
    use_pallas_gate = (gate_impl == "pallas") or (
        gate_impl == "auto"
        and BV * D > (1 << 14)
        and (D % 128 == 0 or 2 * D * D * w_t.dtype.itemsize <= budget))
    if use_pallas_gate:
        gate = _gate_pallas(visual, w_t, b2, budget, capacity)
    else:
        # Tiny matmul: one fewer kernel launch; XLA fuses it with the tiling below.
        gate = jax.nn.sigmoid(
            jnp.dot(visual.astype(jnp.float32), w_t.astype(jnp.float32)) + b2)

    # Layout plumbing (wrapper-side): tile gate along lanes to S*D so the hot
    # kernel is a pure lane-dense multiply; flatten text the same way.
    # Note: lane-dense stores want S*D % 128 == 0 (pad D on the caller side
    # for production shapes that violate this).
    gate_tiled = jnp.tile(gate, (1, S)).reshape(BV, 1, SD)    # (BV, 1, S*D), f32
    text_flat = text.reshape(BT, SD)                           # (BT, S*D)

    in_item = text_flat.dtype.itemsize
    out_item = jnp.dtype(out_dtype).itemsize

    bv_tile, auto_bt, sd_tile = _choose_bcast_tiles(
        BV, BT, SD, in_item, out_item, budget)
    if bt_tile is None:
        bt_tile = auto_bt
        # Megacore: make sure at least two blocks exist when BT allows it.
        if (pl.cdiv(BT, bt_tile) * pl.cdiv(SD, sd_tile) * pl.cdiv(BV, bv_tile) == 1
                and BT >= 16):
            bt_tile = max(8, (pl.cdiv(BT, 2) // 8) * 8)
    else:
        bt_tile = min(bt_tile, BT)

    n_bt = pl.cdiv(BT, bt_tile)
    n_sd = pl.cdiv(SD, sd_tile)
    n_bv = pl.cdiv(BV, bv_tile)

    ws = 2 * (bv_tile * sd_tile * _GATE_ITEM
              + bt_tile * sd_tile * in_item
              + bv_tile * bt_tile * sd_tile * out_item)
    vmem_limit = int(min(max(ws + (4 << 20), 16 << 20), int(0.85 * capacity)))

    grid_spec = pltpu.PrefetchScalarGridSpec(
        num_scalar_prefetch=0,
        # BV innermost: the text tile's block index is constant across it, so
        # every text tile is DMA'd from HBM exactly once.
        grid=(n_bt, n_sd, n_bv),
        in_specs=[
            pl.BlockSpec((bv_tile, 1, sd_tile), lambda j, k, i: (i, 0, k)),  # gate
            pl.BlockSpec((bt_tile, sd_tile), lambda j, k, i: (j, k)),        # text
        ],
        out_specs=pl.BlockSpec((bv_tile, bt_tile, sd_tile),
                               lambda j, k, i: (i, j, k)),
    )

    out_flat = pl.pallas_call(
        bcast_mul_kernel,
        out_shape=jax.ShapeDtypeStruct((BV, BT, SD), out_dtype),
        grid_spec=grid_spec,
        compiler_params=pltpu.CompilerParams(
            dimension_semantics=("parallel", "parallel", "arbitrary"),
            vmem_limit_bytes=vmem_limit),
        cost_estimate=pl.CostEstimate(
            flops=BV * BT * SD,
            transcendentals=0,
            bytes_accessed=(out_item * BV * BT * SD            # output written once
                            + in_item * BT * SD * n_bv         # text read once iff BV fused
                            + _GATE_ITEM * BV * SD * n_bt)),   # small gate re-reads
    )(gate_tiled, text_flat)

    # Collapse of contiguous trailing dims -> free reshape back to (BV, BT, S, D).
    return out_flat.reshape(BV, BT, S, D)


if __name__ == "__main__":
    key = jax.random.PRNGKey(0)
    k_v, k_t, k_w, k_b = jax.random.split(key, 4)

    BV, BT, S, D = 2, 3, 8, 32   # batch_v, batch_t, seq, embed_dim

    visual = jax.random.normal(k_v, (BV, D), dtype=jnp.float32)
    text = jax.random.normal(k_t, (BT, S, D), dtype=jnp.float32)

    # Deterministic parameter init (PyTorch nn.Linear(dim, dim): W (D, D), b (D,))
    bound = 1.0 / (D ** 0.5)
    w = jax.random.uniform(k_w, (D, D), minval=-bound, maxval=bound, dtype=jnp.float32)
    b = jax.random.uniform(k_b, (D,), minval=-bound, maxval=bound, dtype=jnp.float32)

    # Pure-JAX reference
    gate_ref = jax.nn.sigmoid(visual @ w.T + b)                 # (BV, D)
    ref = gate_ref[:, None, None, :] * text[None, :, :, :]      # (BV, BT, S, D)

    # 1) default path (jnp gate at this tiny size + fused broadcast-multiply kernel)
    out = jax.block_until_ready(cross_attention(visual, text, w, b))
    assert out.shape == (BV, BT, S, D)
    assert jnp.allclose(out, ref, atol=1e-5, rtol=1e-5)

    # 2) force the Pallas gate (Linear+Sigmoid) kernel path
    out2 = jax.block_until_ready(cross_attention(visual, text, w, b, gate_impl="pallas"))
    assert jnp.allclose(out2, ref, atol=1e-5, rtol=1e-5)

    # 3) larger BT exercising BT tiling with a ragged final tile
    BT2 = 20
    text2 = jax.random.normal(jax.random.PRNGKey(1), (BT2, S, D), dtype=jnp.float32)
    out3 = jax.block_until_ready(cross_attention(visual, text2, w, b, bt_tile=8))
    ref3 = gate_ref[:, None, None, :] * text2[None, :, :, :]
    assert out3.shape == (BV, BT2, S, D)
    assert jnp.allclose(out3, ref3, atol=1e-5, rtol=1e-5)

    print("KERNEL_OK")
</pallas_src>

<mosaic_0001>
module attributes {stable_mosaic.version = 11 : i64} {
  func.func @bcast_mul_kernel(%arg0: i32, %arg1: i32, %arg2: i32, %arg3: memref<2x1x256xf32, #tpu.memory_space<vmem>>, %arg4: memref<3x256xf32, #tpu.memory_space<vmem>>, %arg5: memref<2x3x256xf32, #tpu.memory_space<vmem>>) attributes {dimension_semantics = [#tpu.dimension_semantics<parallel>, #tpu.dimension_semantics<parallel>, #tpu.dimension_semantics<arbitrary>], iteration_bounds = array<i64: 1, 1, 1>, scalar_prefetch = 0 : i64, scratch_operands = 0 : i64, tpu.core_type = #tpu.core_type<tc>, window_params = [{transform_indices = @transform_0, window_bounds = array<i64: 2, 1, 256>}, {transform_indices = @transform_1, window_bounds = array<i64: 3, 256>}, {transform_indices = @transform_2, window_bounds = array<i64: 2, 3, 256>}]} {
    %c0 = arith.constant 0 : index
    %c0_0 = arith.constant 0 : index
    %c0_1 = arith.constant 0 : index
    %0 = vector.load %arg3[%c0, %c0_0, %c0_1] : memref<2x1x256xf32, #tpu.memory_space<vmem>>, vector<2x1x256xf32>
    %c0_2 = arith.constant 0 : index
    %c0_3 = arith.constant 0 : index
    %1 = vector.load %arg4[%c0_2, %c0_3] : memref<3x256xf32, #tpu.memory_space<vmem>>, vector<3x256xf32>
    %2 = vector.shape_cast %1 : vector<3x256xf32> to vector<1x3x256xf32>
    %3 = vector.broadcast %0 : vector<2x1x256xf32> to vector<2x3x256xf32>
    %4 = vector.broadcast %2 : vector<1x3x256xf32> to vector<2x3x256xf32>
    %5 = arith.mulf %3, %4 : vector<2x3x256xf32>
    %c0_4 = arith.constant 0 : index
    %c0_5 = arith.constant 0 : index
    %c0_6 = arith.constant 0 : index
    %6 = vector.load %arg5[%c0_4, %c0_5, %c0_6] : memref<2x3x256xf32, #tpu.memory_space<vmem>>, vector<2x3x256xf32>
    tpu.vector_store %arg5[%c0_4, %c0_5, %c0_6], %5 {strides = array<i32>} : memref<2x3x256xf32, #tpu.memory_space<vmem>>, vector<2x3x256xf32>,
    return
  }
  func.func @transform_0(%arg0: i32, %arg1: i32, %arg2: i32) -> (i32, i32, i32) {
    %c0_i32 = arith.constant 0 : i32
    %c0_i32_0 = arith.constant 0 : i32
    return %arg2, %c0_i32, %arg1 : i32, i32, i32
  }
  func.func @transform_1(%arg0: i32, %arg1: i32, %arg2: i32) -> (i32, i32) {
    %c0_i32 = arith.constant 0 : i32
    return %arg0, %arg1 : i32, i32
  }
  func.func @transform_2(%arg0: i32, %arg1: i32, %arg2: i32) -> (i32, i32, i32) {
    %c0_i32 = arith.constant 0 : i32
    return %arg2, %arg0, %arg1 : i32, i32, i32
  }
}

</mosaic_0001>

<llo_original>
// kernel: tpu_custom_call.1
$region0: #{tpu_custom_call.1}
  #allocation0 [shape = 'u32[]', space=smem, size = 0x4, offset = 0x4, fixed_abs, tag = 'smem constant byte address 0x4 - core index']
  #allocation1 [shape = 'u32[144,128]{1,0:T(1,128)}', space=vmem, size = 0x12000, scoped, tag = 'internal scratch']
  %s0 = inlined_call_operand.hbm [shape: f32[2,1,256], index: 0, kind: input, shape index: {}]
  %s1 = inlined_call_operand.hbm [shape: f32[3,256], index: 1, kind: input, shape index: {}]
  %s2 = inlined_call_operand.vmem [shape: f32[2,3,256], index: 2, kind: output, shape index: {}]
  %s3 = sld [smem:[#allocation0]]
  $region26: #{tpu_custom_call.1} parent=0
    _
  %s5 = ssub.s32 1, %s3
  %s6 = scalar_select 0, %s5, %s3
  $region1: #{tpu_custom_call.1} parent=0
    #allocation2 [shape = 'u8[2048]{0}', space=vmem, size = 0x800, scoped, tag = 'input window, operand 0, single buffered']
    #allocation3 [shape = 's32[1]{0}', space=sflag, size = 0x4, scoped, tag = 'scoped memory for tpu_custom_call.1']
    #allocation4 [shape = 'u8[4096]{0}', space=vmem, size = 0x1000, scoped, tag = 'input window, operand 1, single buffered']
    #allocation5 [shape = 's32[1]{0}', space=sflag, size = 0x4, scoped, tag = 'scoped memory for tpu_custom_call.1']
    %7 = vsyncpa [#allocation3], 0
    %8 = vsyncpa [#allocation5], 0
    // Predicated region
    $region2: #{tpu_custom_call.1} parent=1 // pred_check
      _
    $region3: #{tpu_custom_call.1} parent=1 // pred_check_branch
      %10 = sbr.rel (0) target = $region5
    $region4: #{tpu_custom_call.1} parent=1 // pred_region
      %s12 = ssub.s32 64, 64
      %13 = vsyncadd [#allocation3], %s12
      %s14 = sshll.u32 [#allocation2], 4
      %s15 = int_to_ptr.vmem [resolvable:$true] %s14
      %20 = dma.hbm_to_vmem [thread:$0]  %s0, 64, %s15, [#allocation3], 32, 32, 2
    $region5: #{tpu_custom_call.1} parent=1 // pred_fallthru
      _
    // Predicated region
    $region6: #{tpu_custom_call.1} parent=1 // pred_check
      _
    $region7: #{tpu_custom_call.1} parent=1 // pred_check_branch
      %22 = sbr.rel (0) target = $region9
    $region8: #{tpu_custom_call.1} parent=1 // pred_region
      %s24 = ssub.s32 128, 128
      %25 = vsyncadd [#allocation5], %s24
      %s27 = sshll.u32 [#allocation4], 4
      %s28 = int_to_ptr.vmem [resolvable:$true] %s27
      %30 = dma.hbm_to_vmem [thread:$0]  %s1, 128, %s28, [#allocation5]
    $region9: #{tpu_custom_call.1} parent=1 // pred_fallthru
      _
    // Predicated region
    $region10: #{tpu_custom_call.1} parent=1 // pred_check
      _
    $region11: #{tpu_custom_call.1} parent=1 // pred_check_branch
      %32 = sbr.rel (0) target = $region13
    $region12: #{tpu_custom_call.1} parent=1 // pred_region
      %33 = dma.done [#allocation3], 64
    $region13: #{tpu_custom_call.1} parent=1 // pred_fallthru
      _
    // Predicated region
    $region14: #{tpu_custom_call.1} parent=1 // pred_check
      _
    $region15: #{tpu_custom_call.1} parent=1 // pred_check_branch
      %35 = sbr.rel (0) target = $region17
    $region16: #{tpu_custom_call.1} parent=1 // pred_region
      %36 = dma.done [#allocation5], 128
    $region17: #{tpu_custom_call.1} parent=1 // pred_fallthru
      _
    %v37 = vld [vmem:[#allocation2] sm:$0x3]
    %v38 = vld [vmem:[#allocation2 + $0x2] sm:$0x3]
    %v39 = vld [vmem:[#allocation4] sm:$0x77]
    %v42 = vlaneseq
    %v43 = vshrl.u32 %v42, 7
    %v44 = vsub.s32 0, %v43
    %v45 = vrot.slane %v37, %v44
    %v46 = vlaneseq
    %v47 = vshrl.u32 %v46, 7
    %v48 = vsub.s32 1, %v47
    %v49 = vrot.slane %v37, %v48
    %v50 = vlaneseq
    %v51 = vshrl.u32 %v50, 7
    %v52 = vsub.s32 0, %v51
    %v53 = vrot.slane %v38, %v52
    %v54 = vlaneseq
    %v55 = vshrl.u32 %v54, 7
    %v56 = vsub.s32 1, %v55
    %v57 = vrot.slane %v38, %v56
    %v63 = vcombine.high %v39, %v39
    %v65 = vmul.f32 %v45, %v39
    %v66 = vmul.f32 %v49, %v63
    %v67 = vmul.f32 %v53, %v39
    %v68 = vmul.f32 %v57, %v63
    %v73 = vcombine.low %v65, %v66
    %v74 = vcombine.low %v67, %v68
    %77 = vst [vmem:[%s2] sm:$0x77] %v73
    %78 = vst [vmem:[%s2 + $0x8] sm:$0x77] %v74
    // Predicated region
    $region18: #{tpu_custom_call.1} parent=1 // pred_check
      _
    $region19: #{tpu_custom_call.1} parent=1 // pred_check_branch
      %80 = sbr.rel (0) target = $region21
    $region20: #{tpu_custom_call.1} parent=1 // pred_region
      _
    $region21: #{tpu_custom_call.1} parent=1 // pred_fallthru
      _
    // Predicated region
    $region22: #{tpu_custom_call.1} parent=1 // pred_check
      _
    $region23: #{tpu_custom_call.1} parent=1 // pred_check_branch
      %82 = sbr.rel (0) target = $region25
    $region24: #{tpu_custom_call.1} parent=1 // pred_region
      _
    $region25: #{tpu_custom_call.1} parent=1 // pred_fallthru
      _
    %83 = vsyncpa [#allocation3], 1
    %84 = vsyncpa [#allocation5], 1

</llo_original>
